<compile_context>
chip_gen: v6e
topology: v6e:2x2x1
jax: 0.10.0
libtpu: 0.0.40
codegen_flags: <defaults>
</compile_context>

<pallas_src>
import functools

import numpy as np
import jax
import jax.numpy as jnp
from jax import lax
from jax.experimental import pallas as pl
from jax.experimental.pallas import tpu as pltpu

F32 = jnp.float32
EPS = 1e-5            # nn.InstanceNorm2d default eps
NEG_SLOPE = 0.01      # nn.LeakyReLU default negative_slope
VMEM_LIMIT = 40 * 1024 * 1024   # fits v5e/v6e (128 MiB) and v7x (64 MiB) parts


def _cparams(*sem):
    return pltpu.CompilerParams(dimension_semantics=sem,
                                vmem_limit_bytes=VMEM_LIMIT)


def _spatial_tile(hw, cap=131072):
    """Largest divisor of hw that is <= cap (all our hw are powers of 4*16)."""
    if hw <= cap:
        return hw
    t = cap
    while hw % t:
        t //= 2
    return t


# ---------------------------------------------------------------------------
# Small dense matmul + bias (used only for the tiny up1/up2 transposed convs).
# ---------------------------------------------------------------------------
def _mm_kernel(a_ref, w_ref, b_ref, o_ref):
    o_ref[...] = (jnp.dot(a_ref[...], w_ref[...],
                          preferred_element_type=jnp.float32)
                  + b_ref[...]).astype(o_ref.dtype)


def matmul_bias(a, w, b):
    M, K = a.shape
    N = w.shape[1]
    return pl.pallas_call(
        _mm_kernel,
        out_shape=jax.ShapeDtypeStruct((M, N), F32),
        grid=(1,),
        in_specs=[pl.BlockSpec((M, K), lambda i: (0, 0)),
                  pl.BlockSpec((K, N), lambda i: (0, 0)),
                  pl.BlockSpec((1, N), lambda i: (0, 0))],
        out_specs=pl.BlockSpec((M, N), lambda i: (0, 0)),
        compiler_params=_cparams("arbitrary"),
    )(a.astype(F32), w.astype(F32), b.reshape(1, N).astype(F32))


# ---------------------------------------------------------------------------
# InstanceNorm2d statistics: per-(batch, channel) sum / sum-of-squares over
# the spatial axis (spatial on lanes, channels on sublanes).
# ---------------------------------------------------------------------------
def _stats_kernel(h_ref, s_ref, q_ref):
    @pl.when(pl.program_id(1) == 0)
    def _():
        s_ref[...] = jnp.zeros_like(s_ref)
        q_ref[...] = jnp.zeros_like(q_ref)

    x = h_ref[0]                                       # (C, T)
    s_ref[0] += jnp.sum(x, axis=1, keepdims=True)
    q_ref[0] += jnp.sum(x * x, axis=1, keepdims=True)


def instance_stats(h):
    """h: (B, C, HW) -> (mean, var), each (B, C, 1), biased variance."""
    B, C, HW = h.shape
    T = _spatial_tile(HW)
    grid = (B, HW // T)
    s, q = pl.pallas_call(
        _stats_kernel,
        out_shape=(jax.ShapeDtypeStruct((B, C, 1), F32),
                   jax.ShapeDtypeStruct((B, C, 1), F32)),
        grid=grid,
        in_specs=[pl.BlockSpec((1, C, T), lambda b, t: (b, 0, t))],
        out_specs=(pl.BlockSpec((1, C, 1), lambda b, t: (b, 0, 0)),
                   pl.BlockSpec((1, C, 1), lambda b, t: (b, 0, 0))),
        compiler_params=_cparams("parallel", "arbitrary"),
    )(h)
    mean = s / HW
    # NOTE: one-pass E[x^2]-mean^2 in f32, clamped at 0 (inputs are O(1)).
    var = jnp.maximum(q / HW - mean * mean, 0.0)
    return mean, var


# ---------------------------------------------------------------------------
# Fused AIILayerLambda apply kernel: instance-norm apply, 1x1 convs
# (gamma/beta_attr in one dot), fc1/fc2 id modulation, mask conv_2h + sigmoid,
# final blend.  Spatial axis (T) is on lanes.
# ---------------------------------------------------------------------------
def _aii_apply_kernel(h_ref, za_ref, lm_ref, zid_ref, mean_ref, var_ref,
                      w12_ref, b12_ref, fcw_ref, fcb_ref,
                      wmh_ref, wml_ref, bm_ref, o_ref, *, ch):
    h = h_ref[0]                                       # (Ch, T)
    hn = (h - mean_ref[0]) * lax.rsqrt(var_ref[0] + EPS)

    za = za_ref[0]                                     # (Ca, T)
    lm = lm_ref[0]                                     # (Cl, T)

    # gamma_attr / beta_attr from one fused (2Ch, Ca) x (Ca, T) MXU dot.
    ab = jnp.dot(w12_ref[...], za,
                 preferred_element_type=jnp.float32) + b12_ref[...]

    # gamma_id / beta_id from z_id (tiny, recomputed per tile).
    zid = zid_ref[0]                                   # (1, c_id)
    gb = jnp.sum(fcw_ref[...] * zid, axis=1, keepdims=True) + fcb_ref[...]

    # M = sigmoid(conv_2h(cat(h_norm, lamb)))  (1x1 conv -> sublane reduction)
    m_lin = (jnp.sum(hn * wmh_ref[...], axis=0, keepdims=True)
             + jnp.sum(lm * wml_ref[...], axis=0, keepdims=True)
             + bm_ref[...])                            # (1, T)
    M = jax.nn.sigmoid(m_lin)

    A = ab[:ch] * hn + ab[ch:]
    I = gb[:ch] * hn + gb[ch:]
    o_ref[0] = ((1.0 - M) * A + M * I).astype(o_ref.dtype)


def aii_layer(p, h, z_attr, zid3, lamb):
    """AIILayerLambda.forward.  h/z_attr/lamb: (B, C, H, W); zid3: (B,1,c_id)."""
    B, Ch, H, W = h.shape
    Ca = z_attr.shape[1]
    Cl = lamb.shape[1]
    cid = zid3.shape[2]
    HW = H * W

    h2 = h.reshape(B, Ch, HW)
    a2 = z_attr.reshape(B, Ca, HW)
    l2 = lamb.reshape(B, Cl, HW)

    mean, var = instance_stats(h2)

    T = _spatial_tile(HW)
    grid = (B, HW // T)
    kernel = functools.partial(_aii_apply_kernel, ch=Ch)

    out = pl.pallas_call(
        kernel,
        out_shape=jax.ShapeDtypeStruct((B, Ch, HW), F32),
        grid=grid,
        in_specs=[
            pl.BlockSpec((1, Ch, T), lambda b, t: (b, 0, t)),      # h
            pl.BlockSpec((1, Ca, T), lambda b, t: (b, 0, t)),      # z_attr
            pl.BlockSpec((1, Cl, T), lambda b, t: (b, 0, t)),      # lamb
            pl.BlockSpec((1, 1, cid), lambda b, t: (b, 0, 0)),     # z_id
            pl.BlockSpec((1, Ch, 1), lambda b, t: (b, 0, 0)),      # mean
            pl.BlockSpec((1, Ch, 1), lambda b, t: (b, 0, 0)),      # var
            pl.BlockSpec((2 * Ch, Ca), lambda b, t: (0, 0)),       # conv1|conv2 W
            pl.BlockSpec((2 * Ch, 1), lambda b, t: (0, 0)),        # conv1|conv2 b
            pl.BlockSpec((2 * Ch, cid), lambda b, t: (0, 0)),      # fc1|fc2 W
            pl.BlockSpec((2 * Ch, 1), lambda b, t: (0, 0)),        # fc1|fc2 b
            pl.BlockSpec((Ch, 1), lambda b, t: (0, 0)),            # conv_2h (h part)
            pl.BlockSpec((Cl, 1), lambda b, t: (0, 0)),            # conv_2h (lamb part)
            pl.BlockSpec((1, 1), lambda b, t: (0, 0)),             # conv_2h bias
        ],
        out_specs=pl.BlockSpec((1, Ch, T), lambda b, t: (b, 0, t)),
        compiler_params=_cparams("parallel", "parallel"),
    )(h2, a2, l2, zid3, mean, var,
      p["w12"], p["b12"], p["fc12_w"], p["fc12_b"],
      p["wmh"], p["wml"], p["bm"])
    return out.reshape(B, Ch, H, W)


# ---------------------------------------------------------------------------
# Direct 3x3 conv (stride 1, pad 1, no bias) with fused LeakyReLU on the
# input.  The padded image stays resident in VMEM; each output row is one
# (Cout_t, 9*Cin) x (9*Cin, W) MXU dot built from shifted in-VMEM slices.
# ---------------------------------------------------------------------------
def _conv3x3_kernel(x_ref, w_ref, o_ref, *, lrelu):
    cin = x_ref.shape[1]
    cout_t = o_ref.shape[1]
    H = o_ref.shape[2]
    W = o_ref.shape[3]

    co = pl.program_id(1)
    w_blk = w_ref[pl.ds(co * cout_t, cout_t), :]        # (cout_t, 9*cin)

    def body(y, carry):
        parts = []
        for dy in range(3):
            r = x_ref[0, :, pl.ds(y + dy, 1), :]        # (cin, 1, W+2)
            r = r[:, 0, :]                              # (cin, W+2)
            if lrelu:
                r = jnp.where(r >= 0, r, NEG_SLOPE * r)
            for dx in range(3):
                parts.append(r[:, dx:dx + W])           # (cin, W)
        cat = jnp.concatenate(parts, axis=0)            # (9*cin, W)
        res = jnp.dot(w_blk, cat, preferred_element_type=jnp.float32)
        o_ref[0, :, pl.ds(y, 1), :] = res[:, None, :].astype(o_ref.dtype)
        return carry

    lax.fori_loop(0, H, body, 0)


def conv3x3(x, w_mat, *, lrelu):
    """x: (B, Cin, H, W); w_mat: (Cout, 9*Cin) with columns (dy, dx, ci)."""
    B, Cin, H, W = x.shape
    Cout = w_mat.shape[0]
    xp = jnp.pad(x, ((0, 0), (0, 0), (1, 1), (1, 1)))
    cout_t = Cout if Cout * H * W * 4 <= 4 * 2**20 else 1
    grid = (B, Cout // cout_t)
    kernel = functools.partial(_conv3x3_kernel, lrelu=lrelu)
    return pl.pallas_call(
        kernel,
        out_shape=jax.ShapeDtypeStruct((B, Cout, H, W), F32),
        grid=grid,
        in_specs=[pl.BlockSpec((1, Cin, H + 2, W + 2), lambda b, c: (b, 0, 0, 0)),
                  pl.BlockSpec((Cout, 9 * Cin), lambda b, c: (0, 0))],
        out_specs=pl.BlockSpec((1, cout_t, H, W), lambda b, c: (b, c, 0, 0)),
        compiler_params=_cparams("parallel", "arbitrary"),
    )(xp, w_mat)


def aii_res_block(p, h, z_attr, zid3, lamb):
    x = aii_layer(p["aad1"], h, z_attr, zid3, lamb)
    x = conv3x3(x, p["conv1_w"], lrelu=True)            # relu1 then conv1
    x = aii_layer(p["aad2"], x, z_attr, zid3, lamb)
    x = conv3x3(x, p["conv2_w"], lrelu=True)            # relu2 then conv2
    if p["cin"] != p["cout"]:
        h = aii_layer(p["aad3"], h, z_attr, zid3, lamb)
        h = conv3x3(h, p["conv3_w"], lrelu=True)        # relu3 then conv3
    return x + h


# ---------------------------------------------------------------------------
# F.interpolate(scale_factor=2, mode='bilinear', align_corners=True) as a
# single Pallas kernel: out_c = Wr @ x_c @ Wc^T (no host transposes).
# ---------------------------------------------------------------------------
def _bilinear_matrix(S):
    out = 2 * S
    i = np.arange(out, dtype=np.float64)
    src = i * (S - 1) / (out - 1)
    i0 = np.floor(src).astype(np.int64)
    i1 = np.minimum(i0 + 1, S - 1)
    f = (src - i0).astype(np.float32)
    Wm = np.zeros((out, S), np.float32)
    Wm[np.arange(out), i0] += 1.0 - f
    Wm[np.arange(out), i1] += f
    return Wm


def _upsample_kernel(x_ref, wr_ref, wc_ref, o_ref):
    wr = wr_ref[...]                                    # (2H, H)
    wc = wc_ref[...]                                    # (W, 2W)
    ct = x_ref.shape[1]
    for c in range(ct):
        xc = x_ref[0, c]                                # (H, W)
        t = jnp.dot(wr, xc, preferred_element_type=jnp.float32)
        o_ref[0, c] = jnp.dot(t, wc, preferred_element_type=jnp.float32)


def upsample2x_bilinear(x):
    B, C, H, W = x.shape
    wr = jnp.asarray(_bilinear_matrix(H))               # (2H, H)
    wc = jnp.asarray(_bilinear_matrix(W).T)             # (W, 2W)
    per = H * W * 4 * 5                                 # x + 4x out per channel
    ct = C
    while ct > 1 and ct * per > 8 * 2**20:
        ct //= 2
    grid = (B, C // ct)
    return pl.pallas_call(
        _upsample_kernel,
        out_shape=jax.ShapeDtypeStruct((B, C, 2 * H, 2 * W), F32),
        grid=grid,
        in_specs=[pl.BlockSpec((1, ct, H, W), lambda b, c: (b, c, 0, 0)),
                  pl.BlockSpec((2 * H, H), lambda b, c: (0, 0)),
                  pl.BlockSpec((W, 2 * W), lambda b, c: (0, 0))],
        out_specs=pl.BlockSpec((1, ct, 2 * H, 2 * W), lambda b, c: (b, c, 0, 0)),
        compiler_params=_cparams("parallel", "parallel"),
    )(x, wr, wc)


# ---------------------------------------------------------------------------
# Transposed convolutions (kernel 2) expressed as tiny matmuls.
# ---------------------------------------------------------------------------
def conv_transpose_up1(z, w, b):
    # z: (B, c_id); w: (c_id, 4*Cout), columns ordered (o, ky, kx).
    B = z.shape[0]
    Cout = b.shape[0]
    y = matmul_bias(z, w, jnp.repeat(b, 4))             # (B, 4*Cout)
    return y.reshape(B, Cout, 2, 2)


def conv_transpose_up2(x, w, b):
    # x: (B, C, H, W); w: (C, 4*Cout) -> (B, Cout, 2H, 2W)   [kernel 2, stride 2]
    B, C, H, W = x.shape
    Cout = b.shape[0]
    a = jnp.transpose(x, (0, 2, 3, 1)).reshape(B * H * W, C)
    y = matmul_bias(a, w, jnp.repeat(b, 4))             # (B*H*W, 4*Cout)
    y = y.reshape(B, H, W, Cout, 2, 2)
    y = jnp.transpose(y, (0, 3, 1, 4, 2, 5)).reshape(B, Cout, 2 * H, 2 * W)
    return y


# ---------------------------------------------------------------------------
# Parameter initialization (deterministic, synthetic, numpy-side).
# ---------------------------------------------------------------------------
SCALE = 32


def _sc(c):
    return max(c // SCALE, 1)


# (cin, cout, c_attr, c_lamb) per AIIResBlkLambda, scaled from the original.
BLOCK_CFG = [
    (_sc(1024), _sc(1024), _sc(1024), _sc(1024)),
    (_sc(1024), _sc(1024), _sc(2048), _sc(1024)),
    (_sc(1024), _sc(1024), _sc(1024), _sc(512)),
    (_sc(1024), _sc(512), _sc(512), _sc(256)),
    (_sc(512), _sc(256), _sc(256), _sc(128)),
    (_sc(256), _sc(128), _sc(128), _sc(64)),
    (_sc(128), _sc(64), _sc(64), _sc(32)),
    (_sc(64), _sc(64), _sc(64), _sc(32)),
    (_sc(64), 3, _sc(64), _sc(32)),          # final block outputs 3 channels
]
C_ID = _sc(512)


def _init_aii_layer(rng, c_h, c_attr, c_id, c_lamb):
    def nrm(shape, std):
        return jnp.asarray(rng.normal(0.0, std, shape), F32)
    k2h = np.sqrt(2.0 / (c_h + c_lamb))
    return dict(
        w12=nrm((2 * c_h, c_attr), np.sqrt(2.0 / c_attr)),   # conv1 | conv2
        b12=jnp.zeros((2 * c_h, 1), F32),
        fc12_w=nrm((2 * c_h, c_id), 0.001),                  # Linear: N(0, 0.001)
        fc12_b=jnp.zeros((2 * c_h, 1), F32),
        wmh=nrm((c_h, 1), k2h),                              # conv_2h (h part)
        wml=nrm((c_lamb, 1), k2h),                           # conv_2h (lamb part)
        bm=jnp.zeros((1, 1), F32),
    )


def _init_res_block(rng, cin, cout, c_attr, c_id, c_lamb):
    def conv_w(ci, co):
        return jnp.asarray(rng.normal(0.0, np.sqrt(2.0 / (9 * ci)),
                                      (co, 9 * ci)), F32)
    p = dict(
        cin=cin, cout=cout,
        aad1=_init_aii_layer(rng, cin, c_attr, c_id, c_lamb),
        conv1_w=conv_w(cin, cin),
        aad2=_init_aii_layer(rng, cin, c_attr, c_id, c_lamb),
        conv2_w=conv_w(cin, cout),
    )
    if cin != cout:
        p["aad3"] = _init_aii_layer(rng, cin, c_attr, c_id, c_lamb)
        p["conv3_w"] = conv_w(cin, cout)
    return p


def init_params(seed=0):
    rng = np.random.default_rng(seed)
    c1 = _sc(1024)

    def nrm(shape, std):
        return jnp.asarray(rng.normal(0.0, std, shape), F32)

    return dict(
        up1_w=nrm((C_ID, 4 * c1), np.sqrt(2.0 / (4 * C_ID))),
        up1_b=jnp.zeros((c1,), F32),
        up2_w=nrm((c1, 4 * c1), np.sqrt(2.0 / (4 * c1))),
        up2_b=jnp.zeros((c1,), F32),
        up3_w=nrm((c1, 4 * c1), np.sqrt(2.0 / (4 * c1))),
        up3_b=jnp.zeros((c1,), F32),
        blocks=[_init_res_block(rng, cin, cout, ca, C_ID, cl)
                for (cin, cout, ca, cl) in BLOCK_CFG],
    )


# ---------------------------------------------------------------------------
# AII1024.forward
# ---------------------------------------------------------------------------
def aii1024_forward(params, z_id, z_attr, lamb):
    B = z_id.shape[0]
    zid3 = z_id.reshape(B, 1, z_id.shape[1])

    m = conv_transpose_up1(z_id, params["up1_w"], params["up1_b"])      # up1
    m = conv_transpose_up2(m, params["up2_w"], params["up2_b"])         # up2
    if m.shape[-1] != z_attr[0].shape[-1]:                              # torch: shape[-1]
        m = conv_transpose_up2(m, params["up3_w"], params["up3_b"])     # up3

    blocks = params["blocks"]
    for i in range(8):
        m = aii_res_block(blocks[i], m, z_attr[i], zid3, lamb[i])
        m = upsample2x_bilinear(m)
    y = aii_res_block(blocks[8], m, z_attr[8], zid3, lamb[8])
    return jnp.tanh(y)


if __name__ == "__main__":
    B = 2
    params = init_params(seed=0)

    key = jax.random.PRNGKey(0)
    keys = jax.random.split(key, 1 + 2 * len(BLOCK_CFG))
    z_id = jax.random.normal(keys[0], (B, C_ID), F32)

    z_attr, lamb = [], []
    S = 4                                   # z_attr[0] is 4x4 -> up3 path is skipped
    for i, (cin, cout, c_attr, c_lamb) in enumerate(BLOCK_CFG):
        z_attr.append(jax.random.normal(keys[1 + 2 * i], (B, c_attr, S, S), F32))
        lamb.append(jax.random.normal(keys[2 + 2 * i], (B, c_lamb, S, S), F32))
        S *= 2

    y = aii1024_forward(params, z_id, z_attr, lamb)
    y = jax.block_until_ready(y)
    assert y.shape == (B, 3, 1024, 1024), y.shape
    assert bool(jnp.all(jnp.isfinite(y)))
    print("KERNEL_OK")
</pallas_src>

<mosaic_0001>
module attributes {stable_mosaic.version = 11 : i64} {
  func.func @_mm_kernel(%arg0: i32, %arg1: memref<2x16xf32, #tpu.memory_space<vmem>>, %arg2: memref<16x128xf32, #tpu.memory_space<vmem>>, %arg3: memref<1x128xf32, #tpu.memory_space<vmem>>, %arg4: memref<2x128xf32, #tpu.memory_space<vmem>>) attributes {dimension_semantics = [#tpu.dimension_semantics<arbitrary>], iteration_bounds = array<i64: 1>, scalar_prefetch = 0 : i64, scratch_operands = 0 : i64, tpu.core_type = #tpu.core_type<tc>, window_params = [{pipeline_mode = #tpu.pipeline_mode<synchronous>, transform_indices = @transform_0, window_bounds = array<i64: 2, 16>}, {pipeline_mode = #tpu.pipeline_mode<synchronous>, transform_indices = @transform_1, window_bounds = array<i64: 16, 128>}, {pipeline_mode = #tpu.pipeline_mode<synchronous>, transform_indices = @transform_2, window_bounds = array<i64: 1, 128>}, {pipeline_mode = #tpu.pipeline_mode<synchronous>, transform_indices = @transform_3, window_bounds = array<i64: 2, 128>}]} {
    %c0 = arith.constant 0 : index
    %c0_0 = arith.constant 0 : index
    %0 = vector.load %arg1[%c0, %c0_0] : memref<2x16xf32, #tpu.memory_space<vmem>>, vector<2x16xf32>
    %c0_1 = arith.constant 0 : index
    %c0_2 = arith.constant 0 : index
    %1 = vector.load %arg2[%c0_1, %c0_2] : memref<16x128xf32, #tpu.memory_space<vmem>>, vector<16x128xf32>
    %cst = arith.constant dense<0.000000e+00> : vector<2x128xf32>
    %2 = tpu.matmul %0, %1, %cst {dimension_numbers = #tpu.dot_dimension_numbers<[1], [0], [0], [1], [0, 0, 1, 1], [], []>} : vector<2x16xf32>, vector<16x128xf32>, vector<2x128xf32> -> vector<2x128xf32>
    %c0_3 = arith.constant 0 : index
    %c0_4 = arith.constant 0 : index
    %3 = vector.load %arg3[%c0_3, %c0_4] : memref<1x128xf32, #tpu.memory_space<vmem>>, vector<1x128xf32>
    %4 = vector.broadcast %3 : vector<1x128xf32> to vector<2x128xf32>
    %5 = arith.addf %2, %4 : vector<2x128xf32>
    %c0_5 = arith.constant 0 : index
    %c0_6 = arith.constant 0 : index
    %6 = vector.load %arg4[%c0_5, %c0_6] : memref<2x128xf32, #tpu.memory_space<vmem>>, vector<2x128xf32>
    tpu.vector_store %arg4[%c0_5, %c0_6], %5 {strides = array<i32>} : memref<2x128xf32, #tpu.memory_space<vmem>>, vector<2x128xf32>,
    return
  }
  func.func @transform_0(%arg0: i32) -> (i32, i32) {
    %c0_i32 = arith.constant 0 : i32
    %c0_i32_0 = arith.constant 0 : i32
    %c0_i32_1 = arith.constant 0 : i32
    return %c0_i32, %c0_i32_0 : i32, i32
  }
  func.func @transform_1(%arg0: i32) -> (i32, i32) {
    %c0_i32 = arith.constant 0 : i32
    %c0_i32_0 = arith.constant 0 : i32
    %c0_i32_1 = arith.constant 0 : i32
    return %c0_i32, %c0_i32_0 : i32, i32
  }
  func.func @transform_2(%arg0: i32) -> (i32, i32) {
    %c0_i32 = arith.constant 0 : i32
    %c0_i32_0 = arith.constant 0 : i32
    %c0_i32_1 = arith.constant 0 : i32
    return %c0_i32, %c0_i32_0 : i32, i32
  }
  func.func @transform_3(%arg0: i32) -> (i32, i32) {
    %c0_i32 = arith.constant 0 : i32
    %c0_i32_0 = arith.constant 0 : i32
    %c0_i32_1 = arith.constant 0 : i32
    return %c0_i32, %c0_i32_0 : i32, i32
  }
}

</mosaic_0001>

<llo_original>
// kernel: tpu_custom_call.1
$region0: #{tpu_custom_call.1}
  #allocation0 [shape = 'u32[]', space=smem, size = 0x4, offset = 0x4, fixed_abs, tag = 'smem constant byte address 0x4 - core index']
  #allocation1 [shape = 'u32[144,128]{1,0:T(1,128)}', space=vmem, size = 0x12000, scoped, tag = 'internal scratch']
  %s0 = inlined_call_operand.hbm [shape: f32[2,16], index: 0, kind: input, shape index: {}]
  %s1 = inlined_call_operand.hbm [shape: f32[16,128], index: 1, kind: input, shape index: {}]
  %s2 = inlined_call_operand.vmem [shape: f32[1,128], index: 2, kind: input, shape index: {}]
  %s3 = inlined_call_operand.hbm [shape: f32[2,128], index: 3, kind: output, shape index: {}]
  %s4 = sld [smem:[#allocation0]]
  $region30: #{tpu_custom_call.1} parent=0
    _
  %s6 = ssub.s32 1, %s4
  %s7 = scalar_select 0, %s6, %s4
  $region1: #{tpu_custom_call.1} parent=0
    #allocation2 [shape = 'u8[1024]{0}', space=vmem, size = 0x400, scoped, tag = 'input window, operand 0, single buffered']
    #allocation3 [shape = 's32[1]{0}', space=sflag, size = 0x4, scoped, tag = 'scoped memory for tpu_custom_call.1']
    #allocation4 [shape = 's32[1]{0}', space=sflag, size = 0x4, scoped, tag = 'scoped memory for tpu_custom_call.1']
    #allocation5 [shape = 'u8[8192]{0}', space=vmem, size = 0x2000, scoped, tag = 'input window, operand 1, single buffered']
    #allocation6 [shape = 's32[1]{0}', space=sflag, size = 0x4, scoped, tag = 'scoped memory for tpu_custom_call.1']
    #allocation7 [shape = 'u8[1024]{0}', space=vmem, size = 0x400, scoped, tag = 'output window, operand 0, single buffered']
    %8 = vsyncpa [#allocation3], 0
    %9 = vsyncpa [#allocation6], 0
    %10 = vsyncpa [#allocation4], 0
    // Predicated region
    $region2: #{tpu_custom_call.1} parent=1 // pred_check
      _
    $region3: #{tpu_custom_call.1} parent=1 // pred_check_branch
      %12 = sbr.rel (0) target = $region5
    $region4: #{tpu_custom_call.1} parent=1 // pred_region
      %s14 = ssub.s32 32, 32
      %15 = vsyncadd [#allocation3], %s14
      %s17 = sshll.u32 [#allocation2], 4
      %s18 = int_to_ptr.vmem [resolvable:$true] %s17
      %20 = dma.hbm_to_vmem [thread:$0]  %s0, 32, %s18, [#allocation3]
    $region5: #{tpu_custom_call.1} parent=1 // pred_fallthru
      _
    // Predicated region
    $region6: #{tpu_custom_call.1} parent=1 // pred_check
      _
    $region7: #{tpu_custom_call.1} parent=1 // pred_check_branch
      %22 = sbr.rel (0) target = $region9
    $region8: #{tpu_custom_call.1} parent=1 // pred_region
      %s24 = ssub.s32 256, 256
      %25 = vsyncadd [#allocation6], %s24
      %s26 = sshll.u32 [#allocation5], 4
      %s27 = int_to_ptr.vmem [resolvable:$true] %s26
      %32 = dma.hbm_to_vmem [thread:$0]  %s1, 256, %s27, [#allocation6], 128, 128, 8
    $region9: #{tpu_custom_call.1} parent=1 // pred_fallthru
      _
    // Predicated region
    $region10: #{tpu_custom_call.1} parent=1 // pred_check
      _
    $region11: #{tpu_custom_call.1} parent=1 // pred_check_branch
      %34 = sbr.rel (0) target = $region13
    $region12: #{tpu_custom_call.1} parent=1 // pred_region
      _
    $region13: #{tpu_custom_call.1} parent=1 // pred_fallthru
      _
    // Predicated region
    $region14: #{tpu_custom_call.1} parent=1 // pred_check
      _
    $region15: #{tpu_custom_call.1} parent=1 // pred_check_branch
      %36 = sbr.rel (0) target = $region17
    $region16: #{tpu_custom_call.1} parent=1 // pred_region
      %37 = dma.done [#allocation3], 32
    $region17: #{tpu_custom_call.1} parent=1 // pred_fallthru
      _
    // Predicated region
    $region18: #{tpu_custom_call.1} parent=1 // pred_check
      _
    $region19: #{tpu_custom_call.1} parent=1 // pred_check_branch
      %39 = sbr.rel (0) target = $region21
    $region20: #{tpu_custom_call.1} parent=1 // pred_region
      %40 = dma.done [#allocation6], 256
    $region21: #{tpu_custom_call.1} parent=1 // pred_fallthru
      _
    %v41 = vld [vmem:[#allocation2] sm:$0x3]
    %v42 = vld [vmem:[#allocation5] sm:$0xff]
    %v43 = vld [vmem:[#allocation5 + $0x8] sm:$0xff]
    %v44 = vld [vmem:[%s2] sm:$0x1]
    %v46 = vlaneseq
    %v47 = vshrl.u32 %v46, 7
    %v48 = vsub.s32 0, %v47
    %v49 = vrot.slane %v44, %v48
    %vm51 = vcmask 130048
    %v53 = vsel %vm51, %v41, 0
    %55 = vmatprep.subr.mxu0 0.0
    %56 = vmatpush1.msra.mxu0 0.0
    %57 = vmatprep.subr.mxu0 0.0
    %58 = vmatpush1.msra.mxu0 0.0
    %59 = vmatprep.subr.mxu0 0.0
    %60 = vmatpush1.msra.mxu0 0.0
    %61 = vmatprep.subr.mxu0 0.0
    %62 = vmatpush1.msra.mxu0 0.0
    %63 = vmatprep.subr.mxu0 0.0
    %64 = vmatpush1.msra.mxu0 0.0
    %65 = vmatprep.subr.mxu0 0.0
    %66 = vmatpush1.msra.mxu0 0.0
    %67 = vmatprep.subr.mxu0 0.0
    %68 = vmatpush1.msra.mxu0 0.0
    %69 = vmatprep.subr.mxu0 0.0
    %70 = vmatpush1.msra.mxu0 0.0
    %71 = vmatprep.subr.mxu0 0.0
    %72 = vmatpush1.msra.mxu0 0.0
    %73 = vmatprep.subr.mxu0 0.0
    %74 = vmatpush1.msra.mxu0 0.0
    %75 = vmatprep.subr.mxu0 0.0
    %76 = vmatpush1.msra.mxu0 0.0
    %77 = vmatprep.subr.mxu0 0.0
    %78 = vmatpush1.msra.mxu0 0.0
    %79 = vmatprep.subr.mxu0 0.0
    %80 = vmatpush1.msra.mxu0 0.0
    %81 = vmatprep.subr.mxu0 0.0
    %82 = vmatpush1.msra.mxu0 0.0
    %83 = vmatprep.subr.mxu0 0.0
    %84 = vmatpush1.msra.mxu0 %v43
    %85 = vmatprep.subr.mxu0 0.0
    %86 = vmatpush1.msra.mxu0 %v42
    %87 = vmatprep.subr.mxu0 0.0
    %88 = vmatpush2.msra.mxu0 0.0
    %89 = vmatprep.subr.mxu0 0.0
    %90 = vmatpush2.msra.mxu0 0.0
    %91 = vmatprep.subr.mxu0 0.0
    %92 = vmatpush2.msra.mxu0 0.0
    %93 = vmatprep.subr.mxu0 0.0
    %94 = vmatpush2.msra.mxu0 0.0
    %95 = vmatprep.subr.mxu0 0.0
    %96 = vmatpush2.msra.mxu0 0.0
    %97 = vmatprep.subr.mxu0 0.0
    %98 = vmatpush2.msra.mxu0 0.0
    %99 = vmatprep.subr.mxu0 0.0
    %100 = vmatpush2.msra.mxu0 0.0
    %101 = vmatprep.subr.mxu0 0.0
    %102 = vmatpush2.msra.mxu0 0.0
    %103 = vmatprep.subr.mxu0 0.0
    %104 = vmatpush2.msra.mxu0 0.0
    %105 = vmatprep.subr.mxu0 0.0
    %106 = vmatpush2.msra.mxu0 0.0
    %107 = vmatprep.subr.mxu0 0.0
    %108 = vmatpush2.msra.mxu0 0.0
    %109 = vmatprep.subr.mxu0 0.0
    %110 = vmatpush2.msra.mxu0 0.0
    %111 = vmatprep.subr.mxu0 0.0
    %112 = vmatpush2.msra.mxu0 0.0
    %113 = vmatprep.subr.mxu0 0.0
    %114 = vmatpush2.msra.mxu0 0.0
    %115 = vmatprep.subr.mxu0 0.0
    %116 = vmatpush2.msra.mxu0 0.0
    %117 = vmatprep.subr.mxu0 0.0
    %118 = vmatpush2.msra.mxu0 0.0
    %119 = vmatprep.mubr.f32.mxu0 0.0
    %120 = vmatmul.mubr.f32.gmra.mxu0 %v53
    %v121 = vpop.f32.mrf.mxu0
    %v122 = vadd.f32 %v49, %v121
    %v123 = vpop.f32.mrf.mxu0
    %124 = vdwg.mxu0
    %125 = vst [vmem:[#allocation7] sm:$0x3] %v122
    // Predicated region
    $region22: #{tpu_custom_call.1} parent=1 // pred_check
      _
    $region23: #{tpu_custom_call.1} parent=1 // pred_check_branch
      %127 = sbr.rel (0) target = $region25
    $region24: #{tpu_custom_call.1} parent=1 // pred_region
      %s129 = ssub.s32 32, 32
      %130 = vsyncadd [#allocation4], %s129
      %s132 = sshll.u32 [#allocation7], 4
      %s133 = int_to_ptr.vmem [resolvable:$true] %s132
      %135 = dma.vmem_to_hbm [thread:$0]  %s133, 32, %s3, [#allocation4]
    $region25: #{tpu_custom_call.1} parent=1 // pred_fallthru
      _
    // Predicated region
    $region26: #{tpu_custom_call.1} parent=1 // pred_check
      _
    $region27: #{tpu_custom_call.1} parent=1 // pred_check_branch
      %137 = sbr.rel (0) target = $region29
    $region28: #{tpu_custom_call.1} parent=1 // pred_region
      %138 = dma.done [#allocation4], 32
    $region29: #{tpu_custom_call.1} parent=1 // pred_fallthru
      _
    %139 = vsyncpa [#allocation3], 1
    %140 = vsyncpa [#allocation6], 1
    %141 = vsyncpa [#allocation4], 1

</llo_original>
